<compile_context>
chip_gen: v7x
topology: tpu7x:2x2x1
jax: 0.10.0
libtpu: 0.0.40
codegen_flags: <defaults>
</compile_context>

<pallas_src>
import functools

import jax
import jax.numpy as jnp
from jax import lax
from jax.experimental import pallas as pl
from jax.experimental.pallas import tpu as pltpu


def sine_mlp_kernel(x_ref, w1_ref, b1_ref, w2_ref, b2_ref, w3_ref, b3_ref,
                    ot_ref, *, compute_dtype):
    """Fused 3-layer MLP; hidden activations kept batch-on-lanes (transposed).

    x : (bt, d_in)   activation tile, natural (row-major) layout — no wrapper .T
    wN: (out, in)    weights in PyTorch nn.Linear layout
    bN: (out, 1)     f32 biases, broadcast along the lane (batch) axis
    ot: (d_out, bt)  lane-dense output tile (batch on lanes)
    """
    x = x_ref[...].astype(compute_dtype)                         # (bt, d_in)
    # z1^T = W1 @ x^T without materializing x^T: contract d_in of both operands.
    z1 = lax.dot_general(w1_ref[...], x, (((1,), (1,)), ((), ())),
                         preferred_element_type=jnp.float32) + b1_ref[...]
    h1 = jnp.tanh(z1).astype(compute_dtype)                      # (h1, bt)
    z2 = jnp.dot(w2_ref[...], h1,
                 preferred_element_type=jnp.float32) + b2_ref[...]
    h2 = jnp.tanh(z2).astype(compute_dtype)                      # (h2, bt)
    y = jnp.dot(w3_ref[...], h2,
                preferred_element_type=jnp.float32) + b3_ref[...]
    ot_ref[...] = y.astype(ot_ref.dtype)                         # (d_out, bt)


def _pick_batch_tile(B):
    """Big lane-dense tiles; even step count preferred (v7x megacore balance)."""
    cands = [t for t in (16384, 8192, 4096, 2048, 1024, 512, 256, 128)
             if t < B and B % t == 0]
    # Largest lane-dense divisor giving an even (>=2) number of grid steps so
    # both v7x TensorCores get equal work; harmless on single-TC v5e/v6e.
    for t in cands:
        if (B // t) % 2 == 0:
            return t
    # No even split available: a single big tile is only a few MB of VMEM up to
    # ~16K examples and avoids per-step overhead entirely.
    if B <= 16384 or not cands:
        # TODO(synk): pad ragged batches to a multiple of 128 (masked last tile)
        # instead of falling back to one giant tile for very large awkward B.
        return B
    return cands[0]


def sine_nn_forward(x, params, *, batch_tile=None, compute_dtype=jnp.float32):
    """x: (B, d_in) float32. params: W (out, in) / b (out, 1) like nn.Linear.

    compute_dtype=jnp.bfloat16 is an optional v6e/v7x knob (bf16 VPU/EUP/MXU);
    the default f32 path is essentially free on this memory-bound workload.
    """
    B, d_in = x.shape
    w1, b1 = params["W1"], params["b1"]
    w2, b2 = params["W2"], params["b2"]
    w3, b3 = params["W3"], params["b3"]
    h1, h2, d_out = w1.shape[0], w2.shape[0], w3.shape[0]

    if batch_tile is None:
        batch_tile = _pick_batch_tile(B)
    assert B % batch_tile == 0, "pad batch to a multiple of batch_tile"

    w1c = w1.astype(compute_dtype)
    w2c = w2.astype(compute_dtype)
    w3c = w3.astype(compute_dtype)

    grid = (B // batch_tile,)
    const = lambda i: (0, 0)   # weights/biases: same block every step (VMEM-resident)
    rows = lambda i: (i, 0)    # x: batch-tiled along its leading (row) axis
    cols = lambda i: (0, i)    # output: batch-tiled along its lane axis

    kernel = functools.partial(sine_mlp_kernel, compute_dtype=compute_dtype)

    yt = pl.pallas_call(
        kernel,
        out_shape=jax.ShapeDtypeStruct((d_out, B), x.dtype),
        grid_spec=pl.GridSpec(
            grid=grid,
            in_specs=[
                pl.BlockSpec((batch_tile, d_in), rows),   # x tile (no wrapper .T)
                pl.BlockSpec((h1, d_in), const),          # W1
                pl.BlockSpec((h1, 1), const),             # b1
                pl.BlockSpec((h2, h1), const),            # W2
                pl.BlockSpec((h2, 1), const),             # b2
                pl.BlockSpec((d_out, h2), const),         # W3
                pl.BlockSpec((d_out, 1), const),          # b3
            ],
            out_specs=pl.BlockSpec((d_out, batch_tile), cols),
        ),
        compiler_params=pltpu.CompilerParams(
            dimension_semantics=("parallel",),
        ),
    )(x, w1c, b1, w2c, b2, w3c, b3)

    # Small layout fix-up to match the PyTorch (B, d_out) contract; consumers
    # that accept (d_out, B) can take `yt` directly and skip this pass.
    return yt.T


def init_params(key, input_dim, output_dim, hidden1, hidden2):
    """nn.Linear-style init: W (out, in), b (out, 1), U(-1/sqrt(in), 1/sqrt(in))."""
    ks = jax.random.split(key, 6)

    def linear(kw, kb, fan_in, fan_out):
        bound = 1.0 / jnp.sqrt(float(fan_in))
        w = jax.random.uniform(kw, (fan_out, fan_in), jnp.float32, -bound, bound)
        b = jax.random.uniform(kb, (fan_out, 1), jnp.float32, -bound, bound)
        return w, b

    w1, b1 = linear(ks[0], ks[1], input_dim, hidden1)
    w2, b2 = linear(ks[2], ks[3], hidden1, hidden2)
    w3, b3 = linear(ks[4], ks[5], hidden2, output_dim)
    return {"W1": w1, "b1": b1, "W2": w2, "b2": b2, "W3": w3, "b3": b3}


def reference_forward(x, p):
    # Pure-JAX reference matching PyTorch: y = tanh(tanh(x@W1.T+b1)@W2.T+b2)@W3.T+b3
    h1 = jnp.tanh(x @ p["W1"].T + p["b1"].T)
    h2 = jnp.tanh(h1 @ p["W2"].T + p["b2"].T)
    return h2 @ p["W3"].T + p["b3"].T


if __name__ == "__main__":
    # SineNN(inputDim=8, outputDim=4, hiddenDim1=32, hiddenDim2=32), batch of 16.
    input_dim, output_dim, hidden1, hidden2 = 8, 4, 32, 32
    batch = 16

    key = jax.random.PRNGKey(0)
    k_params, k_x = jax.random.split(key)
    params = init_params(k_params, input_dim, output_dim, hidden1, hidden2)
    x = jax.random.normal(k_x, (batch, input_dim), jnp.float32)

    y = sine_nn_forward(x, params)
    jax.block_until_ready(y)

    y_ref = reference_forward(x, params)
    assert y.shape == (batch, output_dim)
    # Full-f32 compute path -> tight tolerance vs. the f32 reference.
    assert jnp.allclose(y, y_ref, atol=1e-4, rtol=1e-4), "mismatch vs reference"

    print("KERNEL_OK")
</pallas_src>

<mosaic_0001>
module attributes {stable_mosaic.version = 11 : i64} {
  func.func @sine_mlp_kernel(%arg0: i32, %arg1: memref<16x8xf32, #tpu.memory_space<vmem>>, %arg2: memref<32x8xf32, #tpu.memory_space<vmem>>, %arg3: memref<32x1xf32, #tpu.memory_space<vmem>>, %arg4: memref<32x32xf32, #tpu.memory_space<vmem>>, %arg5: memref<32x1xf32, #tpu.memory_space<vmem>>, %arg6: memref<4x32xf32, #tpu.memory_space<vmem>>, %arg7: memref<4x1xf32, #tpu.memory_space<vmem>>, %arg8: memref<4x16xf32, #tpu.memory_space<vmem>>) attributes {dimension_semantics = [#tpu.dimension_semantics<parallel>], iteration_bounds = array<i64: 1>, scalar_prefetch = 0 : i64, scratch_operands = 0 : i64, tpu.core_type = #tpu.core_type<tc>, window_params = [{transform_indices = @transform_0, window_bounds = array<i64: 16, 8>}, {pipeline_mode = #tpu.pipeline_mode<synchronous>, transform_indices = @transform_1, window_bounds = array<i64: 32, 8>}, {pipeline_mode = #tpu.pipeline_mode<synchronous>, transform_indices = @transform_2, window_bounds = array<i64: 32, 1>}, {pipeline_mode = #tpu.pipeline_mode<synchronous>, transform_indices = @transform_3, window_bounds = array<i64: 32, 32>}, {pipeline_mode = #tpu.pipeline_mode<synchronous>, transform_indices = @transform_4, window_bounds = array<i64: 32, 1>}, {pipeline_mode = #tpu.pipeline_mode<synchronous>, transform_indices = @transform_5, window_bounds = array<i64: 4, 32>}, {pipeline_mode = #tpu.pipeline_mode<synchronous>, transform_indices = @transform_6, window_bounds = array<i64: 4, 1>}, {transform_indices = @transform_7, window_bounds = array<i64: 4, 16>}]} {
    %c0 = arith.constant 0 : index
    %c0_0 = arith.constant 0 : index
    %0 = vector.load %arg1[%c0, %c0_0] : memref<16x8xf32, #tpu.memory_space<vmem>>, vector<16x8xf32>
    %c0_1 = arith.constant 0 : index
    %c0_2 = arith.constant 0 : index
    %1 = vector.load %arg2[%c0_1, %c0_2] : memref<32x8xf32, #tpu.memory_space<vmem>>, vector<32x8xf32>
    %cst = arith.constant dense<0.000000e+00> : vector<32x16xf32>
    %2 = tpu.matmul %1, %0, %cst {dimension_numbers = #tpu.dot_dimension_numbers<[1], [1], [0], [0], [0, 0, 1, 0], [], []>} : vector<32x8xf32>, vector<16x8xf32>, vector<32x16xf32> -> vector<32x16xf32>
    %c0_3 = arith.constant 0 : index
    %c0_4 = arith.constant 0 : index
    %3 = vector.load %arg3[%c0_3, %c0_4] : memref<32x1xf32, #tpu.memory_space<vmem>>, vector<32x1xf32>
    %4 = vector.broadcast %3 : vector<32x1xf32> to vector<32x16xf32>
    %5 = arith.addf %2, %4 : vector<32x16xf32>
    %6 = math.tanh %5 : vector<32x16xf32>
    %c0_5 = arith.constant 0 : index
    %c0_6 = arith.constant 0 : index
    %7 = vector.load %arg4[%c0_5, %c0_6] : memref<32x32xf32, #tpu.memory_space<vmem>>, vector<32x32xf32>
    %cst_7 = arith.constant dense<0.000000e+00> : vector<32x16xf32>
    %8 = tpu.matmul %7, %6, %cst_7 {dimension_numbers = #tpu.dot_dimension_numbers<[1], [0], [0], [1], [0, 0, 1, 1], [], []>} : vector<32x32xf32>, vector<32x16xf32>, vector<32x16xf32> -> vector<32x16xf32>
    %c0_8 = arith.constant 0 : index
    %c0_9 = arith.constant 0 : index
    %9 = vector.load %arg5[%c0_8, %c0_9] : memref<32x1xf32, #tpu.memory_space<vmem>>, vector<32x1xf32>
    %10 = vector.broadcast %9 : vector<32x1xf32> to vector<32x16xf32>
    %11 = arith.addf %8, %10 : vector<32x16xf32>
    %12 = math.tanh %11 : vector<32x16xf32>
    %c0_10 = arith.constant 0 : index
    %c0_11 = arith.constant 0 : index
    %13 = vector.load %arg6[%c0_10, %c0_11] : memref<4x32xf32, #tpu.memory_space<vmem>>, vector<4x32xf32>
    %cst_12 = arith.constant dense<0.000000e+00> : vector<4x16xf32>
    %14 = tpu.matmul %13, %12, %cst_12 {dimension_numbers = #tpu.dot_dimension_numbers<[1], [0], [0], [1], [0, 0, 1, 1], [], []>} : vector<4x32xf32>, vector<32x16xf32>, vector<4x16xf32> -> vector<4x16xf32>
    %c0_13 = arith.constant 0 : index
    %c0_14 = arith.constant 0 : index
    %15 = vector.load %arg7[%c0_13, %c0_14] : memref<4x1xf32, #tpu.memory_space<vmem>>, vector<4x1xf32>
    %16 = vector.broadcast %15 : vector<4x1xf32> to vector<4x16xf32>
    %17 = arith.addf %14, %16 : vector<4x16xf32>
    %c0_15 = arith.constant 0 : index
    %c0_16 = arith.constant 0 : index
    %18 = vector.load %arg8[%c0_15, %c0_16] : memref<4x16xf32, #tpu.memory_space<vmem>>, vector<4x16xf32>
    tpu.vector_store %arg8[%c0_15, %c0_16], %17 {strides = array<i32>} : memref<4x16xf32, #tpu.memory_space<vmem>>, vector<4x16xf32>,
    return
  }
  func.func @transform_0(%arg0: i32) -> (i32, i32) {
    %c0_i32 = arith.constant 0 : i32
    %c0_i32_0 = arith.constant 0 : i32
    return %arg0, %c0_i32 : i32, i32
  }
  func.func @transform_1(%arg0: i32) -> (i32, i32) {
    %c0_i32 = arith.constant 0 : i32
    %c0_i32_0 = arith.constant 0 : i32
    %c0_i32_1 = arith.constant 0 : i32
    return %c0_i32, %c0_i32_0 : i32, i32
  }
  func.func @transform_2(%arg0: i32) -> (i32, i32) {
    %c0_i32 = arith.constant 0 : i32
    %c0_i32_0 = arith.constant 0 : i32
    %c0_i32_1 = arith.constant 0 : i32
    return %c0_i32, %c0_i32_0 : i32, i32
  }
  func.func @transform_3(%arg0: i32) -> (i32, i32) {
    %c0_i32 = arith.constant 0 : i32
    %c0_i32_0 = arith.constant 0 : i32
    %c0_i32_1 = arith.constant 0 : i32
    return %c0_i32, %c0_i32_0 : i32, i32
  }
  func.func @transform_4(%arg0: i32) -> (i32, i32) {
    %c0_i32 = arith.constant 0 : i32
    %c0_i32_0 = arith.constant 0 : i32
    %c0_i32_1 = arith.constant 0 : i32
    return %c0_i32, %c0_i32_0 : i32, i32
  }
  func.func @transform_5(%arg0: i32) -> (i32, i32) {
    %c0_i32 = arith.constant 0 : i32
    %c0_i32_0 = arith.constant 0 : i32
    %c0_i32_1 = arith.constant 0 : i32
    return %c0_i32, %c0_i32_0 : i32, i32
  }
  func.func @transform_6(%arg0: i32) -> (i32, i32) {
    %c0_i32 = arith.constant 0 : i32
    %c0_i32_0 = arith.constant 0 : i32
    %c0_i32_1 = arith.constant 0 : i32
    return %c0_i32, %c0_i32_0 : i32, i32
  }
  func.func @transform_7(%arg0: i32) -> (i32, i32) {
    %c0_i32 = arith.constant 0 : i32
    %c0_i32_0 = arith.constant 0 : i32
    return %c0_i32, %arg0 : i32, i32
  }
}

</mosaic_0001>

<llo_original>
// kernel: tpu_custom_call.1
$region0: #{tpu_custom_call.1}
  #allocation0 [shape = 'u32[]', space=smem, size = 0x4, offset = 0x4, fixed_abs, tag = 'smem constant byte address 0x4 - core index']
  #allocation1 [shape = 'u32[144,128]{1,0:T(1,128)}', space=vmem, size = 0x12000, scoped, tag = 'internal scratch']
  %s0 = inlined_call_operand.vmem [shape: f32[16,8], index: 0, kind: input, shape index: {}]
  %s1 = inlined_call_operand.vmem [shape: f32[32,8], index: 1, kind: input, shape index: {}]
  %s2 = inlined_call_operand.vmem [shape: f32[32,1], index: 2, kind: input, shape index: {}]
  %s3 = inlined_call_operand.vmem [shape: f32[32,32], index: 3, kind: input, shape index: {}]
  %s4 = inlined_call_operand.vmem [shape: f32[32,1], index: 4, kind: input, shape index: {}]
  %s5 = inlined_call_operand.vmem [shape: f32[4,32], index: 5, kind: input, shape index: {}]
  %s6 = inlined_call_operand.vmem [shape: f32[4,1], index: 6, kind: input, shape index: {}]
  %s7 = inlined_call_operand.hbm [shape: f32[4,16], index: 7, kind: output, shape index: {}]
  %s8 = sld [smem:[#allocation0]]
  $region38: #{tpu_custom_call.1} parent=0
    _
  %s10 = ssub.s32 1, %s8
  %s11 = scalar_select 0, %s10, %s8
  $region1: #{tpu_custom_call.1} parent=0
    #allocation2 [shape = 'u8[2048]{0}', space=vmem, size = 0x800, scoped, tag = 'output window, operand 0, single buffered']
    #allocation3 [shape = 's32[1]{0}', space=sflag, size = 0x4, scoped, tag = 'scoped memory for tpu_custom_call.1']
    %12 = vsyncpa [#allocation3], 0
    // Predicated region
    $region2: #{tpu_custom_call.1} parent=1 // pred_check
      _
    $region3: #{tpu_custom_call.1} parent=1 // pred_check_branch
      %14 = sbr.rel (0) target = $region5
    $region4: #{tpu_custom_call.1} parent=1 // pred_region
      _
    $region5: #{tpu_custom_call.1} parent=1 // pred_fallthru
      _
    // Predicated region
    $region6: #{tpu_custom_call.1} parent=1 // pred_check
      _
    $region7: #{tpu_custom_call.1} parent=1 // pred_check_branch
      %16 = sbr.rel (0) target = $region9
    $region8: #{tpu_custom_call.1} parent=1 // pred_region
      _
    $region9: #{tpu_custom_call.1} parent=1 // pred_fallthru
      _
    // Predicated region
    $region10: #{tpu_custom_call.1} parent=1 // pred_check
      _
    $region11: #{tpu_custom_call.1} parent=1 // pred_check_branch
      %18 = sbr.rel (0) target = $region13
    $region12: #{tpu_custom_call.1} parent=1 // pred_region
      _
    $region13: #{tpu_custom_call.1} parent=1 // pred_fallthru
      _
    // Predicated region
    $region14: #{tpu_custom_call.1} parent=1 // pred_check
      _
    $region15: #{tpu_custom_call.1} parent=1 // pred_check_branch
      %20 = sbr.rel (0) target = $region17
    $region16: #{tpu_custom_call.1} parent=1 // pred_region
      _
    $region17: #{tpu_custom_call.1} parent=1 // pred_fallthru
      _
    // Predicated region
    $region18: #{tpu_custom_call.1} parent=1 // pred_check
      _
    $region19: #{tpu_custom_call.1} parent=1 // pred_check_branch
      %22 = sbr.rel (0) target = $region21
    $region20: #{tpu_custom_call.1} parent=1 // pred_region
      _
    $region21: #{tpu_custom_call.1} parent=1 // pred_fallthru
      _
    // Predicated region
    $region22: #{tpu_custom_call.1} parent=1 // pred_check
      _
    $region23: #{tpu_custom_call.1} parent=1 // pred_check_branch
      %24 = sbr.rel (0) target = $region25
    $region24: #{tpu_custom_call.1} parent=1 // pred_region
      _
    $region25: #{tpu_custom_call.1} parent=1 // pred_fallthru
      _
    // Predicated region
    $region26: #{tpu_custom_call.1} parent=1 // pred_check
      _
    $region27: #{tpu_custom_call.1} parent=1 // pred_check_branch
      %26 = sbr.rel (0) target = $region29
    $region28: #{tpu_custom_call.1} parent=1 // pred_region
      _
    $region29: #{tpu_custom_call.1} parent=1 // pred_fallthru
      _
    %v27 = vld [vmem:[%s0] sm:$0xff]
    %v28 = vld [vmem:[%s0 + $0x8] sm:$0xff]
    %v29 = vld [vmem:[%s1] sm:$0xff]
    %v30 = vld [vmem:[%s1 + $0x8] sm:$0xff]
    %v31 = vld [vmem:[%s1 + $0x10] sm:$0xff]
    %v32 = vld [vmem:[%s1 + $0x18] sm:$0xff]
    %v33 = vld [vmem:[%s2] sm:$0xff]
    %v34 = vld [vmem:[%s2 + $0x8] sm:$0xff]
    %v35 = vld [vmem:[%s2 + $0x10] sm:$0xff]
    %v36 = vld [vmem:[%s2 + $0x18] sm:$0xff]
    %38 = vset.pattern.permute.xlu0 0
    %39 = vperm.xlu0 %38, %v33
    %v40 = vpop.permute.xlu0 %39
    %43 = vset.pattern.permute.xlu0 0
    %44 = vperm.xlu0 %43, %v34
    %v45 = vpop.permute.xlu0 %44
    %48 = vset.pattern.permute.xlu0 0
    %49 = vperm.xlu0 %48, %v35
    %v50 = vpop.permute.xlu0 %49
    %53 = vset.pattern.permute.xlu0 0
    %54 = vperm.xlu0 %53, %v36
    %v55 = vpop.permute.xlu0 %54
    %vm57 = vcmask 64512
    %v59 = vsel %vm57, %v29, 0
    %v62 = vsel %vm57, %v30, 0
    %v65 = vsel %vm57, %v31, 0
    %v68 = vsel %vm57, %v32, 0
    %v71 = vsel %vm57, %v27, 0
    %v74 = vsel %vm57, %v28, 0
    %76 = vmatprep.subr.mxu0 0.0
    %77 = vmatpush1.xpose.msra.mxu0 %v71
    %78 = vmatprep.subr.mxu0 0.0
    %79 = vmatpush1.xpose.msra.mxu0 %v74
    %80 = vmatprep.subr.mxu0 0.0
    %81 = vmatpush1.xpose.msra.mxu0 0.0
    %82 = vmatprep.subr.mxu0 0.0
    %83 = vmatpush1.xpose.msra.mxu0 0.0
    %84 = vmatprep.subr.mxu0 0.0
    %85 = vmatpush1.xpose.msra.mxu0 0.0
    %86 = vmatprep.subr.mxu0 0.0
    %87 = vmatpush1.xpose.msra.mxu0 0.0
    %88 = vmatprep.subr.mxu0 0.0
    %89 = vmatpush1.xpose.msra.mxu0 0.0
    %90 = vmatprep.subr.mxu0 0.0
    %91 = vmatpush1.xpose.msra.mxu0 0.0
    %92 = vmatprep.subr.mxu0 0.0
    %93 = vmatpush1.xpose.msra.mxu0 0.0
    %94 = vmatprep.subr.mxu0 0.0
    %95 = vmatpush1.xpose.msra.mxu0 0.0
    %96 = vmatprep.subr.mxu0 0.0
    %97 = vmatpush1.xpose.msra.mxu0 0.0
    %98 = vmatprep.subr.mxu0 0.0
    %99 = vmatpush1.xpose.msra.mxu0 0.0
    %100 = vmatprep.subr.mxu0 0.0
    %101 = vmatpush1.xpose.msra.mxu0 0.0
    %102 = vmatprep.subr.mxu0 0.0
    %103 = vmatpush1.xpose.msra.mxu0 0.0
    %104 = vmatprep.subr.mxu0 0.0
    %105 = vmatpush1.xpose.msra.mxu0 0.0
    %106 = vmatprep.subr.mxu0 0.0
    %107 = vmatpush1.xpose.msra.mxu0 0.0
    %108 = vmatprep.subr.mxu0 0.0
    %109 = vmatpush1.xpose.msra.mxu0 0.0
    %110 = vmatprep.subr.mxu0 0.0
    %111 = vmatpush1.xpose.msra.mxu0 0.0
    %112 = vmatprep.subr.mxu0 0.0
    %113 = vmatpush1.xpose.msra.mxu0 0.0
    %114 = vmatprep.subr.mxu0 0.0
    %115 = vmatpush1.xpose.msra.mxu0 0.0
    %116 = vmatprep.subr.mxu0 0.0
    %117 = vmatpush1.xpose.msra.mxu0 0.0
    %118 = vmatprep.subr.mxu0 0.0
    %119 = vmatpush1.xpose.msra.mxu0 0.0
    %120 = vmatprep.subr.mxu0 0.0
    %121 = vmatpush1.xpose.msra.mxu0 0.0
    %122 = vmatprep.subr.mxu0 0.0
    %123 = vmatpush1.xpose.msra.mxu0 0.0
    %124 = vmatprep.subr.mxu0 0.0
    %125 = vmatpush1.xpose.msra.mxu0 0.0
    %126 = vmatprep.subr.mxu0 0.0
    %127 = vmatpush1.xpose.msra.mxu0 0.0
    %128 = vmatprep.subr.mxu0 0.0
    %129 = vmatpush1.xpose.msra.mxu0 0.0
    %130 = vmatprep.subr.mxu0 0.0
    %131 = vmatpush1.xpose.msra.mxu0 0.0
    %132 = vmatprep.subr.mxu0 0.0
    %133 = vmatpush1.xpose.msra.mxu0 0.0
    %134 = vmatprep.subr.mxu0 0.0
    %135 = vmatpush1.xpose.msra.mxu0 0.0
    %136 = vmatprep.subr.mxu0 0.0
    %137 = vmatpush1.xpose.msra.mxu0 0.0
    %138 = vmatprep.subr.mxu0 0.0
    %139 = vmatpush1.xpose.msra.mxu0 0.0
    %140 = vmatprep.mubr.f32.mxu0 0.0
    %141 = vmatmul.mubr.f32.gmra.mrb[0].mxu0 %v59
    %v142 = vpop.f32.mrb[0].mxu0
    %v143 = vadd.f32 %v40, %v142
    %v144 = vpop.f32.mrb[0].mxu0
    %145 = vmatprep.mubr.f32.mxu0 0.0
    %146 = vmatmul.mubr.f32.gmra.mrb[0].mxu0 %v62
    %v147 = vpop.f32.mrb[0].mxu0
    %v148 = vadd.f32 %v45, %v147
    %v149 = vpop.f32.mrb[0].mxu0
    %150 = vmatprep.mubr.f32.mxu0 0.0
    %151 = vmatmul.mubr.f32.gmra.mrb[0].mxu0 %v65
    %v152 = vpop.f32.mrb[0].mxu0
    %v153 = vadd.f32 %v50, %v152
    %v154 = vpop.f32.mrb[0].mxu0
    %155 = vmatprep.mubr.f32.mxu0 0.0
    %156 = vmatmul.mubr.f32.gmra.mrb[0].mxu0 %v68
    %v157 = vpop.f32.mrb[0].mxu0
    %v158 = vadd.f32 %v55, %v157
    %v159 = vpop.f32.mrb[0].mxu0
    %160 = vdwg.mxu0
    %v161 = vtanh.pop %v143
    %v162 = vtanh.pop %v148
    %v163 = vtanh.pop %v153
    %v164 = vtanh.pop %v158
    %v165 = vld [vmem:[%s3] sm:$0xff]
    %v166 = vld [vmem:[%s3 + $0x8] sm:$0xff]
    %v167 = vld [vmem:[%s3 + $0x10] sm:$0xff]
    %v168 = vld [vmem:[%s3 + $0x18] sm:$0xff]
    %v169 = vld [vmem:[%s4] sm:$0xff]
    %v170 = vld [vmem:[%s4 + $0x8] sm:$0xff]
    %v171 = vld [vmem:[%s4 + $0x10] sm:$0xff]
    %v172 = vld [vmem:[%s4 + $0x18] sm:$0xff]
    %174 = vset.pattern.permute.xlu0 0
    %175 = vperm.xlu0 %174, %v169
    %v176 = vpop.permute.xlu0 %175
    %179 = vset.pattern.permute.xlu0 0
    %180 = vperm.xlu0 %179, %v170
    %v181 = vpop.permute.xlu0 %180
    %184 = vset.pattern.permute.xlu0 0
    %185 = vperm.xlu0 %184, %v171
    %v186 = vpop.permute.xlu0 %185
    %189 = vset.pattern.permute.xlu0 0
    %190 = vperm.xlu0 %189, %v172
    %v191 = vpop.permute.xlu0 %190
    %vm193 = vcmask 261120
    %v195 = vsel %vm193, %v165, 0
    %v198 = vsel %vm193, %v166, 0
    %v201 = vsel %vm193, %v167, 0
    %v204 = vsel %vm193, %v168, 0
    %206 = vmatprep.subr.mxu0 0.0
    %207 = vmatpush1.msra.mxu0 %v161
    %208 = vmatprep.subr.mxu0 0.0
    %209 = vmatpush1.msra.mxu0 %v162
    %210 = vmatprep.subr.mxu0 0.0
    %211 = vmatpush1.msra.mxu0 %v163
    %212 = vmatprep.subr.mxu0 0.0
    %213 = vmatpush1.msra.mxu0 %v164
    %214 = vmatprep.subr.mxu0 0.0
    %215 = vmatpush1.msra.mxu0 0.0
    %216 = vmatprep.subr.mxu0 0.0
    %217 = vmatpush1.msra.mxu0 0.0
    %218 = vmatprep.subr.mxu0 0.0
    %219 = vmatpush1.msra.mxu0 0.0
    %220 = vmatprep.subr.mxu0 0.0
    %221 = vmatpush1.msra.mxu0 0.0
    %222 = vmatprep.subr.mxu0 0.0
    %223 = vmatpush1.msra.mxu0 0.0
    %224 = vmatprep.subr.mxu0 0.0
    %225 = vmatpush1.msra.mxu0 0.0
    %226 = vmatprep.subr.mxu0 0.0
    %227 = vmatpush1.msra.mxu0 0.0
    %228 = vmatprep.subr.mxu0 0.0
    %229 = vmatpush1.msra.mxu0 0.0
    %230 = vmatprep.subr.mxu0 0.0
    %231 = vmatpush1.msra.mxu0 0.0
    %232 = vmatprep.subr.mxu0 0.0
    %233 = vmatpush1.msra.mxu0 0.0
    %234 = vmatprep.subr.mxu0 0.0
    %235 = vmatpush1.msra.mxu0 0.0
    %236 = vmatprep.subr.mxu0 0.0
    %237 = vmatpush1.msra.mxu0 0.0
    %238 = vmatprep.subr.mxu0 0.0
    %239 = vmatpush1.msra.mxu0 0.0
    %240 = vmatprep.subr.mxu0 0.0
    %241 = vmatpush1.msra.mxu0 0.0
    %242 = vmatprep.subr.mxu0 0.0
    %243 = vmatpush1.msra.mxu0 0.0
    %244 = vmatprep.subr.mxu0 0.0
    %245 = vmatpush1.msra.mxu0 0.0
    %246 = vmatprep.subr.mxu0 0.0
    %247 = vmatpush1.msra.mxu0 0.0
    %248 = vmatprep.subr.mxu0 0.0
    %249 = vmatpush1.msra.mxu0 0.0
    %250 = vmatprep.subr.mxu0 0.0
    %251 = vmatpush1.msra.mxu0 0.0
    %252 = vmatprep.subr.mxu0 0.0
    %253 = vmatpush1.msra.mxu0 0.0
    %254 = vmatprep.subr.mxu0 0.0
    %255 = vmatpush1.msra.mxu0 0.0
    %256 = vmatprep.subr.mxu0 0.0
    %257 = vmatpush1.msra.mxu0 0.0
    %258 = vmatprep.subr.mxu0 0.0
    %259 = vmatpush1.msra.mxu0 0.0
    %260 = vmatprep.subr.mxu0 0.0
    %261 = vmatpush1.msra.mxu0 0.0
    %262 = vmatprep.subr.mxu0 0.0
    %263 = vmatpush1.msra.mxu0 0.0
    %264 = vmatprep.subr.mxu0 0.0
    %265 = vmatpush1.msra.mxu0 0.0
    %266 = vmatprep.subr.mxu0 0.0
    %267 = vmatpush1.msra.mxu0 0.0
    %268 = vmatprep.subr.mxu0 0.0
    %269 = vmatpush1.msra.mxu0 0.0
    %270 = vmatprep.mubr.f32.mxu0 0.0
    %271 = vmatmul.mubr.f32.gmra.mrb[0].mxu0 %v195
    %v272 = vpop.f32.mrb[0].mxu0
    %v273 = vadd.f32 %v176, %v272
    %v274 = vpop.f32.mrb[0].mxu0
    %275 = vmatprep.mubr.f32.mxu0 0.0
    %276 = vmatmul.mubr.f32.gmra.mrb[0].mxu0 %v198
    %v277 = vpop.f32.mrb[0].mxu0
    %v278 = vadd.f32 %v181, %v277
    %v279 = vpop.f32.mrb[0].mxu0
    %280 = vmatprep.mubr.f32.mxu0 0.0
    %281 = vmatmul.mubr.f32.gmra.mrb[0].mxu0 %v201
    %v282 = vpop.f32.mrb[0].mxu0
    %v283 = vadd.f32 %v186, %v282
    %v284 = vpop.f32.mrb[0].mxu0
    %285 = vmatprep.mubr.f32.mxu0 0.0
    %286 = vmatmul.mubr.f32.gmra.mrb[0].mxu0 %v204
    %v287 = vpop.f32.mrb[0].mxu0
    %v288 = vadd.f32 %v191, %v287
    %v289 = vpop.f32.mrb[0].mxu0
    %290 = vdwg.mxu0
    %v291 = vtanh.pop %v273
    %v292 = vtanh.pop %v278
    %v293 = vtanh.pop %v283
    %v294 = vtanh.pop %v288
    %v295 = vld [vmem:[%s5] sm:$0xf]
    %v296 = vld [vmem:[%s6] sm:$0xf]
    %298 = vset.pattern.permute.xlu0 0
    %299 = vperm.xlu0 %298, %v296
    %v300 = vpop.permute.xlu0 %299
    %v303 = vsel %vm193, %v295, 0
    %305 = vmatprep.subr.mxu0 0.0
    %306 = vmatpush1.msra.mxu0 %v291
    %307 = vmatprep.subr.mxu0 0.0
    %308 = vmatpush1.msra.mxu0 %v292
    %309 = vmatprep.subr.mxu0 0.0
    %310 = vmatpush1.msra.mxu0 %v293
    %311 = vmatprep.subr.mxu0 0.0
    %312 = vmatpush1.msra.mxu0 %v294
    %313 = vmatprep.subr.mxu0 0.0
    %314 = vmatpush1.msra.mxu0 0.0
    %315 = vmatprep.subr.mxu0 0.0
    %316 = vmatpush1.msra.mxu0 0.0
    %317 = vmatprep.subr.mxu0 0.0
    %318 = vmatpush1.msra.mxu0 0.0
    %319 = vmatprep.subr.mxu0 0.0
    %320 = vmatpush1.msra.mxu0 0.0
    %321 = vmatprep.subr.mxu0 0.0
    %322 = vmatpush1.msra.mxu0 0.0
    %323 = vmatprep.subr.mxu0 0.0
    %324 = vmatpush1.msra.mxu0 0.0
    %325 = vmatprep.subr.mxu0 0.0
    %326 = vmatpush1.msra.mxu0 0.0
    %327 = vmatprep.subr.mxu0 0.0
    %328 = vmatpush1.msra.mxu0 0.0
    %329 = vmatprep.subr.mxu0 0.0
    %330 = vmatpush1.msra.mxu0 0.0
    %331 = vmatprep.subr.mxu0 0.0
    %332 = vmatpush1.msra.mxu0 0.0
    %333 = vmatprep.subr.mxu0 0.0
    %334 = vmatpush1.msra.mxu0 0.0
    %335 = vmatprep.subr.mxu0 0.0
    %336 = vmatpush1.msra.mxu0 0.0
    %337 = vmatprep.subr.mxu0 0.0
    %338 = vmatpush1.msra.mxu0 0.0
    %339 = vmatprep.subr.mxu0 0.0
    %340 = vmatpush1.msra.mxu0 0.0
    %341 = vmatprep.subr.mxu0 0.0
    %342 = vmatpush1.msra.mxu0 0.0
    %343 = vmatprep.subr.mxu0 0.0
    %344 = vmatpush1.msra.mxu0 0.0
    %345 = vmatprep.subr.mxu0 0.0
    %346 = vmatpush1.msra.mxu0 0.0
    %347 = vmatprep.subr.mxu0 0.0
    %348 = vmatpush1.msra.mxu0 0.0
    %349 = vmatprep.subr.mxu0 0.0
    %350 = vmatpush1.msra.mxu0 0.0
    %351 = vmatprep.subr.mxu0 0.0
    %352 = vmatpush1.msra.mxu0 0.0
    %353 = vmatprep.subr.mxu0 0.0
    %354 = vmatpush1.msra.mxu0 0.0
    %355 = vmatprep.subr.mxu0 0.0
    %356 = vmatpush1.msra.mxu0 0.0
    %357 = vmatprep.subr.mxu0 0.0
    %358 = vmatpush1.msra.mxu0 0.0
    %359 = vmatprep.subr.mxu0 0.0
    %360 = vmatpush1.msra.mxu0 0.0
    %361 = vmatprep.subr.mxu0 0.0
    %362 = vmatpush1.msra.mxu0 0.0
    %363 = vmatprep.subr.mxu0 0.0
    %364 = vmatpush1.msra.mxu0 0.0
    %365 = vmatprep.subr.mxu0 0.0
    %366 = vmatpush1.msra.mxu0 0.0
    %367 = vmatprep.subr.mxu0 0.0
    %368 = vmatpush1.msra.mxu0 0.0
    %369 = vmatprep.mubr.f32.mxu0 0.0
    %370 = vmatmul.mubr.f32.gmra.mrb[0].mxu0 %v303
    %v371 = vpop.f32.mrb[0].mxu0
    %v372 = vadd.f32 %v300, %v371
    %v373 = vpop.f32.mrb[0].mxu0
    %374 = vdwg.mxu0
    %vm375 = vcmask 125952
    %376 = vst.msk [vmem:[#allocation2] sm:$0xf] %vm375, %v372
    // Predicated region
    $region30: #{tpu_custom_call.1} parent=1 // pred_check
      _
    $region31: #{tpu_custom_call.1} parent=1 // pred_check_branch
      %378 = sbr.rel (0) target = $region33
    $region32: #{tpu_custom_call.1} parent=1 // pred_region
      %s380 = ssub.s32 64, 64
      %381 = vsyncadd [#allocation3], %s380
      %s383 = sshll.u32 [#allocation2], 4
      %s384 = int_to_ptr.vmem [resolvable:$true] %s383
      %386 = dma.vmem_to_hbm [thread:$0]  %s384, 64, %s7, [#allocation3]
    $region33: #{tpu_custom_call.1} parent=1 // pred_fallthru
      _
    // Predicated region
    $region34: #{tpu_custom_call.1} parent=1 // pred_check
      _
    $region35: #{tpu_custom_call.1} parent=1 // pred_check_branch
      %388 = sbr.rel (0) target = $region37
    $region36: #{tpu_custom_call.1} parent=1 // pred_region
      %389 = dma.done [#allocation3], 64
    $region37: #{tpu_custom_call.1} parent=1 // pred_fallthru
      _
    %390 = vsyncpa [#allocation3], 1

</llo_original>
